<compile_context>
chip_gen: v7x
topology: tpu7x:2x2x1
jax: 0.10.0
libtpu: 0.0.40
codegen_flags: <defaults>
</compile_context>

<pallas_src>
import functools

import jax
import jax.numpy as jnp
from jax import lax
from jax.experimental import pallas as pl
from jax.experimental.pallas import tpu as pltpu


# ----------------------------- Pallas kernel -------------------------------

def _decoder_block_kernel(x_ref, w1_ref, b1_ref, wp_ref, b2_ref, w3_ref,
                          b3_ref, o_ref, *, W, HW):
    # x_ref: (Cin, HW) f32 ; weights already bf16 with BN scales folded in.
    xb = x_ref[...].astype(jnp.bfloat16)

    # conv1 (1x1, BN1 folded) + ReLU          M=Cmid, K=Cin, N=HW (lane dense)
    h1 = jnp.dot(w1_ref[...], xb, preferred_element_type=jnp.float32)
    h1 = jnp.maximum(h1 + b1_ref[...], 0.0)                  # (Cmid, HW) f32
    h1b = h1.astype(jnp.bfloat16)
    cmid = h1b.shape[0]

    # --- sub-pixel (phase) decomposition of ConvTranspose2d(3, s=2, p=1, op=1)
    # Build the three shifted neighbours (p, q+1), (p+1, q), (p+1, q+1) with
    # zero fill at the right / bottom image border.  The down shifts get their
    # zero rows from the concat; the q+1 shifts additionally mask the last
    # column of each image row (the flat shift would wrap into the next row).
    zc = jnp.zeros((cmid, 1), jnp.bfloat16)
    zr = jnp.zeros((cmid, W), jnp.bfloat16)
    zd = jnp.zeros((cmid, W + 1), jnp.bfloat16)
    h_r = jnp.concatenate([h1b[:, 1:], zc], axis=1)          # (p,   q+1)
    h_d = jnp.concatenate([h1b[:, W:], zr], axis=1)          # (p+1, q  )
    h_rd = jnp.concatenate([h1b[:, W + 1:], zd], axis=1)     # (p+1, q+1)

    col = lax.broadcasted_iota(jnp.int32, (1, HW), 1) % W
    keep = col != (W - 1)
    h_r = jnp.where(keep, h_r, jnp.zeros_like(h_r))
    h_rd = jnp.where(keep, h_rd, jnp.zeros_like(h_rd))

    haug = jnp.concatenate([h1b, h_r, h_d, h_rd], axis=0)    # (4*Cmid, HW)

    # deconv2: ALL 4 output phases in one channel-mix matmul (BN2 folded),
    # then bias + ReLU.  Rows of t are (phase, c_out) with phase = 2a + b.
    t = jnp.dot(wp_ref[...], haug, preferred_element_type=jnp.float32)
    h2 = jnp.maximum(t + b2_ref[...], 0.0)                   # (4*Cmid, HW) f32

    # conv3 (1x1, block-diagonal over the 4 phases, BN3 folded) + ReLU.
    y = jnp.dot(w3_ref[...], h2.astype(jnp.bfloat16),
                preferred_element_type=jnp.float32)
    o_ref[...] = jnp.maximum(y + b3_ref[...], 0.0)           # (4*Cout, HW)


# ----------------------------- host helpers --------------------------------

def _fold_bn(gamma, beta, mean, var, conv_bias, eps=1e-5):
    """Eval-mode BN folded into a per-output-channel scale and bias."""
    s = gamma / jnp.sqrt(var + eps)
    b = beta + s * (conv_bias - mean)
    return s, b


def _phase_weight(wd_s, cmid):
    """Build the (4*Cmid, 4*Cmid) phase weight for the stride-2 transposed conv.

    wd_s[ci, co, ky, kx] is the (BN-scaled) PyTorch ConvTranspose2d weight.
    Output rows are (phase, co) with phase = 2a + b (a = output row parity,
    b = output col parity); columns are (shift_block, ci) with shift blocks
    0: (p,q)  1: (p,q+1)  2: (p+1,q)  3: (p+1,q+1).
    """
    phase_taps = [
        [((1, 1), 0)],                                              # (even, even)
        [((1, 2), 0), ((1, 0), 1)],                                 # (even, odd )
        [((2, 1), 0), ((0, 1), 2)],                                 # (odd , even)
        [((2, 2), 0), ((2, 0), 1), ((0, 2), 2), ((0, 0), 3)],       # (odd , odd )
    ]
    wp = jnp.zeros((4 * cmid, 4 * cmid), jnp.float32)
    for ph, taps in enumerate(phase_taps):
        for (ky, kx), blk in taps:
            wp = wp.at[ph * cmid:(ph + 1) * cmid,
                       blk * cmid:(blk + 1) * cmid].set(wd_s[:, :, ky, kx].T)
    return wp


def decoder_block_forward(x_nchw, params, eps=1e-5):
    """x_nchw: (N, Cin, H, W) f32 -> (N, Cout, 2H, 2W) f32 (eval-mode BN)."""
    x = x_nchw.astype(jnp.float32)
    N, Cin, H, W = x.shape
    Cmid = params["conv1_w"].shape[0]
    Cout = params["conv3_w"].shape[0]
    HW = H * W

    # Fold BN (eval) into the conv / deconv weights and biases (host-side).
    s1, b1 = _fold_bn(params["gamma1"], params["beta1"], params["mean1"],
                      params["var1"], params["conv1_b"], eps)
    s2, b2 = _fold_bn(params["gamma2"], params["beta2"], params["mean2"],
                      params["var2"], params["deconv2_b"], eps)
    s3, b3 = _fold_bn(params["gamma3"], params["beta3"], params["mean3"],
                      params["var3"], params["conv3_b"], eps)

    w1s = (params["conv1_w"][:, :, 0, 0] * s1[:, None]).astype(jnp.bfloat16)

    # ConvTranspose2d weight is (Cin=Cmid, Cout=Cmid, kh, kw); scale the
    # *output* channel axis and build the 4-phase block weight.
    wd_s = params["deconv2_w"] * s2[None, :, None, None]
    wp = _phase_weight(wd_s, Cmid).astype(jnp.bfloat16)      # (4*Cmid, 4*Cmid)

    # conv3 applied identically to each of the 4 phases -> block-diagonal.
    w3s = params["conv3_w"][:, :, 0, 0] * s3[:, None]        # (Cout, Cmid)
    w3blk = jnp.kron(jnp.eye(4, dtype=jnp.float32), w3s).astype(jnp.bfloat16)

    b1c = b1.reshape(Cmid, 1)
    b2t = jnp.tile(b2, 4).reshape(4 * Cmid, 1)
    b3t = jnp.tile(b3, 4).reshape(4 * Cout, 1)

    # NCHW -> channel-major flat layout is a pure reshape (no transpose).
    x_flat = x.reshape(N, Cin, HW)

    kernel = functools.partial(_decoder_block_kernel, W=W, HW=HW)

    out_flat = pl.pallas_call(
        kernel,
        out_shape=jax.ShapeDtypeStruct((N, 4 * Cout, HW), jnp.float32),
        grid_spec=pltpu.PrefetchScalarGridSpec(
            num_scalar_prefetch=0,
            grid=(N,),
            in_specs=[
                pl.BlockSpec((None, Cin, HW), lambda n: (n, 0, 0)),
                pl.BlockSpec((Cmid, Cin), lambda n: (0, 0)),
                pl.BlockSpec((Cmid, 1), lambda n: (0, 0)),
                pl.BlockSpec((4 * Cmid, 4 * Cmid), lambda n: (0, 0)),
                pl.BlockSpec((4 * Cmid, 1), lambda n: (0, 0)),
                pl.BlockSpec((4 * Cout, 4 * Cmid), lambda n: (0, 0)),
                pl.BlockSpec((4 * Cout, 1), lambda n: (0, 0)),
            ],
            out_specs=pl.BlockSpec((None, 4 * Cout, HW), lambda n: (n, 0, 0)),
        ),
        compiler_params=pltpu.CompilerParams(
            dimension_semantics=("parallel",)),
    )(x_flat, w1s, b1c, wp, b2t, w3blk, b3t)

    # (N, 4*Cout, HW) with rows (phase = 2a+b)*Cout + co  ->  NCHW (2H, 2W):
    # interleave the 4 phases (tiny wrapper transpose on ~NxCoutx4xHW floats).
    out = out_flat.reshape(N, 2, 2, Cout, H, W)              # [n, a, b, co, p, q]
    out = jnp.transpose(out, (0, 3, 4, 1, 5, 2))             # [n, co, p, a, q, b]
    return out.reshape(N, Cout, 2 * H, 2 * W)


# ----------------------------- pure-JAX reference ---------------------------

def reference_forward(x, params, eps=1e-5):
    hp = lax.Precision.HIGHEST

    def bn(h, g, b, m, v):
        s = g / jnp.sqrt(v + eps)
        return (h - m[None, :, None, None]) * s[None, :, None, None] \
            + b[None, :, None, None]

    # conv1 (1x1) + BN1 + ReLU
    h = jnp.einsum("oc,nchw->nohw", params["conv1_w"][:, :, 0, 0], x,
                   precision=hp) + params["conv1_b"][None, :, None, None]
    h = jnp.maximum(bn(h, params["gamma1"], params["beta1"],
                       params["mean1"], params["var1"]), 0.0)

    # ConvTranspose2d(3, stride=2, padding=1, output_padding=1) + BN2 + ReLU
    wd = params["deconv2_w"]                                 # (Ci, Co, kh, kw)
    w_conv = jnp.transpose(wd, (1, 0, 2, 3))[:, :, ::-1, ::-1]   # OIHW, flipped
    h = lax.conv_general_dilated(
        h, w_conv, window_strides=(1, 1), padding=((1, 2), (1, 2)),
        lhs_dilation=(2, 2), dimension_numbers=("NCHW", "OIHW", "NCHW"),
        precision=hp) + params["deconv2_b"][None, :, None, None]
    h = jnp.maximum(bn(h, params["gamma2"], params["beta2"],
                       params["mean2"], params["var2"]), 0.0)

    # conv3 (1x1) + BN3 + ReLU
    h = jnp.einsum("oc,nchw->nohw", params["conv3_w"][:, :, 0, 0], h,
                   precision=hp) + params["conv3_b"][None, :, None, None]
    h = jnp.maximum(bn(h, params["gamma3"], params["beta3"],
                       params["mean3"], params["var3"]), 0.0)
    return h


# ----------------------------- params / main --------------------------------

def make_params(key, in_channels, n_filters):
    Cin = in_channels
    Cmid = in_channels // 4
    Cout = n_filters
    ks = jax.random.split(key, 18)
    f32 = jnp.float32

    def rnd(k, shape, scale=0.1):
        return scale * jax.random.normal(k, shape, f32)

    return {
        # PyTorch layouts: Conv2d (out,in,kh,kw); ConvTranspose2d (in,out,kh,kw)
        "conv1_w": rnd(ks[0], (Cmid, Cin, 1, 1)),
        "conv1_b": rnd(ks[1], (Cmid,), 0.05),
        "gamma1": 1.0 + rnd(ks[2], (Cmid,)),
        "beta1": rnd(ks[3], (Cmid,)),
        "mean1": rnd(ks[4], (Cmid,)),
        "var1": 1.0 + jnp.abs(rnd(ks[5], (Cmid,))),
        "deconv2_w": rnd(ks[6], (Cmid, Cmid, 3, 3)),
        "deconv2_b": rnd(ks[7], (Cmid,), 0.05),
        "gamma2": 1.0 + rnd(ks[8], (Cmid,)),
        "beta2": rnd(ks[9], (Cmid,)),
        "mean2": rnd(ks[10], (Cmid,)),
        "var2": 1.0 + jnp.abs(rnd(ks[11], (Cmid,))),
        "conv3_w": rnd(ks[12], (Cout, Cmid, 1, 1)),
        "conv3_b": rnd(ks[13], (Cout,), 0.05),
        "gamma3": 1.0 + rnd(ks[14], (Cout,)),
        "beta3": rnd(ks[15], (Cout,)),
        "mean3": rnd(ks[16], (Cout,)),
        "var3": 1.0 + jnp.abs(rnd(ks[17], (Cout,))),
    }


if __name__ == "__main__":
    key = jax.random.PRNGKey(0)
    k_param, k_x = jax.random.split(key)

    in_channels, n_filters = 16, 8
    N, H, W = 2, 16, 16

    params = make_params(k_param, in_channels, n_filters)
    x = jax.random.normal(k_x, (N, in_channels, H, W), jnp.float32)  # NCHW

    out = jax.block_until_ready(decoder_block_forward(x, params))
    assert out.shape == (N, n_filters, 2 * H, 2 * W), out.shape

    ref = jax.block_until_ready(reference_forward(x, params))
    max_err = float(jnp.max(jnp.abs(out - ref)))
    # bf16 MXU operands (f32 accumulation): tolerance relaxed from the all-f32
    # 5e-3 run; outputs are O(0.1-0.5) so this still validates the math.
    assert jnp.allclose(out, ref, atol=3e-2, rtol=3e-2), max_err

    print("KERNEL_OK")
</pallas_src>

<mosaic_0001>
module attributes {stable_mosaic.version = 11 : i64} {
  func.func @_decoder_block_kernel(%arg0: i32, %arg1: memref<1x16x256xf32, #tpu.memory_space<vmem>>, %arg2: memref<4x16xbf16, #tpu.memory_space<vmem>>, %arg3: memref<4x1xf32, #tpu.memory_space<vmem>>, %arg4: memref<16x16xbf16, #tpu.memory_space<vmem>>, %arg5: memref<16x1xf32, #tpu.memory_space<vmem>>, %arg6: memref<32x16xbf16, #tpu.memory_space<vmem>>, %arg7: memref<32x1xf32, #tpu.memory_space<vmem>>, %arg8: memref<1x32x256xf32, #tpu.memory_space<vmem>>) attributes {dimension_semantics = [#tpu.dimension_semantics<parallel>], iteration_bounds = array<i64: 2>, scalar_prefetch = 0 : i64, scratch_operands = 0 : i64, tpu.core_type = #tpu.core_type<tc>, window_params = [{transform_indices = @transform_0, window_bounds = array<i64: 1, 16, 256>}, {pipeline_mode = #tpu.pipeline_mode<synchronous>, transform_indices = @transform_1, window_bounds = array<i64: 4, 16>}, {pipeline_mode = #tpu.pipeline_mode<synchronous>, transform_indices = @transform_2, window_bounds = array<i64: 4, 1>}, {pipeline_mode = #tpu.pipeline_mode<synchronous>, transform_indices = @transform_3, window_bounds = array<i64: 16, 16>}, {pipeline_mode = #tpu.pipeline_mode<synchronous>, transform_indices = @transform_4, window_bounds = array<i64: 16, 1>}, {pipeline_mode = #tpu.pipeline_mode<synchronous>, transform_indices = @transform_5, window_bounds = array<i64: 32, 16>}, {pipeline_mode = #tpu.pipeline_mode<synchronous>, transform_indices = @transform_6, window_bounds = array<i64: 32, 1>}, {transform_indices = @transform_7, window_bounds = array<i64: 1, 32, 256>}]} {
    %c0 = arith.constant 0 : index
    %c0_0 = arith.constant 0 : index
    %c0_1 = arith.constant 0 : index
    %0 = vector.load %arg1[%c0, %c0_0, %c0_1] : memref<1x16x256xf32, #tpu.memory_space<vmem>>, vector<1x16x256xf32>
    %1 = vector.shape_cast %0 : vector<1x16x256xf32> to vector<16x256xf32>
    %2 = arith.truncf %1 : vector<16x256xf32> to vector<16x256xbf16>
    %c0_2 = arith.constant 0 : index
    %c0_3 = arith.constant 0 : index
    %3 = vector.load %arg2[%c0_2, %c0_3] : memref<4x16xbf16, #tpu.memory_space<vmem>>, vector<4x16xbf16>
    %cst = arith.constant dense<0.000000e+00> : vector<4x256xf32>
    %4 = tpu.matmul %3, %2, %cst {dimension_numbers = #tpu.dot_dimension_numbers<[1], [0], [0], [1], [0, 0, 1, 1], [], []>} : vector<4x16xbf16>, vector<16x256xbf16>, vector<4x256xf32> -> vector<4x256xf32>
    %c0_4 = arith.constant 0 : index
    %c0_5 = arith.constant 0 : index
    %5 = vector.load %arg3[%c0_4, %c0_5] : memref<4x1xf32, #tpu.memory_space<vmem>>, vector<4x1xf32>
    %6 = vector.broadcast %5 : vector<4x1xf32> to vector<4x256xf32>
    %7 = arith.addf %4, %6 : vector<4x256xf32>
    %cst_6 = arith.constant 0.000000e+00 : f32
    %8 = vector.broadcast %cst_6 : f32 to vector<4x256xf32>
    %9 = arith.maximumf %7, %8 : vector<4x256xf32>
    %10 = arith.truncf %9 : vector<4x256xf32> to vector<4x256xbf16>
    %cst_7 = arith.constant 0.000000e+00 : bf16
    %11 = vector.broadcast %cst_7 : bf16 to vector<4x1xbf16>
    %cst_8 = arith.constant 0.000000e+00 : bf16
    %12 = vector.broadcast %cst_8 : bf16 to vector<4x16xbf16>
    %cst_9 = arith.constant 0.000000e+00 : bf16
    %13 = vector.broadcast %cst_9 : bf16 to vector<4x17xbf16>
    %14 = vector.extract_strided_slice %10 {offsets = [0, 1], sizes = [4, 255], strides = [1, 1]} : vector<4x256xbf16> to vector<4x255xbf16>
    %15 = tpu.concatenate %14, %11 in 1 : vector<4x255xbf16>, vector<4x1xbf16> -> vector<4x256xbf16>
    %16 = vector.extract_strided_slice %10 {offsets = [0, 16], sizes = [4, 240], strides = [1, 1]} : vector<4x256xbf16> to vector<4x240xbf16>
    %17 = tpu.concatenate %16, %12 in 1 : vector<4x240xbf16>, vector<4x16xbf16> -> vector<4x256xbf16>
    %18 = vector.extract_strided_slice %10 {offsets = [0, 17], sizes = [4, 239], strides = [1, 1]} : vector<4x256xbf16> to vector<4x239xbf16>
    %19 = tpu.concatenate %18, %13 in 1 : vector<4x239xbf16>, vector<4x17xbf16> -> vector<4x256xbf16>
    %20 = tpu.iota {dimensions = array<i32: 1>} : vector<1x256xi32>
    %c16_i32 = arith.constant 16 : i32
    %c0_i32 = arith.constant 0 : i32
    %21 = arith.cmpi eq, %c16_i32, %c0_i32 : i32
    %c1_i32 = arith.constant 1 : i32
    %22 = arith.select %21, %c1_i32, %c16_i32 : i32
    %23 = vector.broadcast %22 : i32 to vector<1x256xi32>
    %24 = arith.remsi %20, %23 : vector<1x256xi32>
    %c0_i32_10 = arith.constant 0 : i32
    %25 = vector.broadcast %c0_i32_10 : i32 to vector<1x256xi32>
    %26 = arith.cmpi ne, %24, %25 : vector<1x256xi32>
    %c0_i32_11 = arith.constant 0 : i32
    %27 = vector.broadcast %c0_i32_11 : i32 to vector<1x256xi32>
    %28 = arith.cmpi slt, %24, %27 : vector<1x256xi32>
    %c0_i32_12 = arith.constant 0 : i32
    %29 = arith.cmpi slt, %22, %c0_i32_12 : i32
    %30 = vector.broadcast %29 : i1 to vector<1x256xi1>
    %31 = vector.broadcast %30 : vector<1x256xi1> to vector<1x256xi1>
    %32 = arith.xori %28, %31 : vector<1x256xi1>
    %33 = arith.andi %32, %26 : vector<1x256xi1>
    %34 = vector.broadcast %22 : i32 to vector<1x256xi32>
    %35 = arith.addi %24, %34 : vector<1x256xi32>
    %36 = arith.select %33, %35, %24 : vector<1x256xi1>, vector<1x256xi32>
    %c15_i32 = arith.constant 15 : i32
    %37 = vector.broadcast %c15_i32 : i32 to vector<1x256xi32>
    %38 = arith.cmpi ne, %36, %37 : vector<1x256xi32>
    %cst_13 = arith.constant 0.000000e+00 : bf16
    %39 = vector.broadcast %cst_13 : bf16 to vector<4x256xbf16>
    %40 = vector.shape_cast %38 : vector<1x256xi1> to vector<1x256xi1>
    %41 = vector.broadcast %40 : vector<1x256xi1> to vector<4x256xi1>
    %42 = arith.select %41, %15, %39 : vector<4x256xi1>, vector<4x256xbf16>
    %cst_14 = arith.constant 0.000000e+00 : bf16
    %43 = vector.broadcast %cst_14 : bf16 to vector<4x256xbf16>
    %44 = vector.shape_cast %38 : vector<1x256xi1> to vector<1x256xi1>
    %45 = vector.broadcast %44 : vector<1x256xi1> to vector<4x256xi1>
    %46 = arith.select %45, %19, %43 : vector<4x256xi1>, vector<4x256xbf16>
    %47 = tpu.concatenate %10, %42, %17, %46 in 0 : vector<4x256xbf16>, vector<4x256xbf16>, vector<4x256xbf16>, vector<4x256xbf16> -> vector<16x256xbf16>
    %c0_15 = arith.constant 0 : index
    %c0_16 = arith.constant 0 : index
    %48 = vector.load %arg4[%c0_15, %c0_16] : memref<16x16xbf16, #tpu.memory_space<vmem>>, vector<16x16xbf16>
    %cst_17 = arith.constant dense<0.000000e+00> : vector<16x256xf32>
    %49 = tpu.matmul %48, %47, %cst_17 {dimension_numbers = #tpu.dot_dimension_numbers<[1], [0], [0], [1], [0, 0, 1, 1], [], []>} : vector<16x16xbf16>, vector<16x256xbf16>, vector<16x256xf32> -> vector<16x256xf32>
    %c0_18 = arith.constant 0 : index
    %c0_19 = arith.constant 0 : index
    %50 = vector.load %arg5[%c0_18, %c0_19] : memref<16x1xf32, #tpu.memory_space<vmem>>, vector<16x1xf32>
    %51 = vector.broadcast %50 : vector<16x1xf32> to vector<16x256xf32>
    %52 = arith.addf %49, %51 : vector<16x256xf32>
    %cst_20 = arith.constant 0.000000e+00 : f32
    %53 = vector.broadcast %cst_20 : f32 to vector<16x256xf32>
    %54 = arith.maximumf %52, %53 : vector<16x256xf32>
    %c0_21 = arith.constant 0 : index
    %c0_22 = arith.constant 0 : index
    %55 = vector.load %arg6[%c0_21, %c0_22] : memref<32x16xbf16, #tpu.memory_space<vmem>>, vector<32x16xbf16>
    %56 = arith.truncf %54 : vector<16x256xf32> to vector<16x256xbf16>
    %cst_23 = arith.constant dense<0.000000e+00> : vector<32x256xf32>
    %57 = tpu.matmul %55, %56, %cst_23 {dimension_numbers = #tpu.dot_dimension_numbers<[1], [0], [0], [1], [0, 0, 1, 1], [], []>} : vector<32x16xbf16>, vector<16x256xbf16>, vector<32x256xf32> -> vector<32x256xf32>
    %c0_24 = arith.constant 0 : index
    %c0_25 = arith.constant 0 : index
    %58 = vector.load %arg7[%c0_24, %c0_25] : memref<32x1xf32, #tpu.memory_space<vmem>>, vector<32x1xf32>
    %59 = vector.broadcast %58 : vector<32x1xf32> to vector<32x256xf32>
    %60 = arith.addf %57, %59 : vector<32x256xf32>
    %cst_26 = arith.constant 0.000000e+00 : f32
    %61 = vector.broadcast %cst_26 : f32 to vector<32x256xf32>
    %62 = arith.maximumf %60, %61 : vector<32x256xf32>
    %c0_27 = arith.constant 0 : index
    %c0_28 = arith.constant 0 : index
    %c0_29 = arith.constant 0 : index
    %63 = vector.load %arg8[%c0_27, %c0_28, %c0_29] : memref<1x32x256xf32, #tpu.memory_space<vmem>>, vector<1x32x256xf32>
    %64 = vector.shape_cast %63 : vector<1x32x256xf32> to vector<32x256xf32>
    %65 = vector.shape_cast %62 : vector<32x256xf32> to vector<1x32x256xf32>
    tpu.vector_store %arg8[%c0_27, %c0_28, %c0_29], %65 {strides = array<i32>} : memref<1x32x256xf32, #tpu.memory_space<vmem>>, vector<1x32x256xf32>,
    return
  }
  func.func @transform_0(%arg0: i32) -> (i32, i32, i32) {
    %c0_i32 = arith.constant 0 : i32
    %c0_i32_0 = arith.constant 0 : i32
    %c0_i32_1 = arith.constant 0 : i32
    return %arg0, %c0_i32, %c0_i32_0 : i32, i32, i32
  }
  func.func @transform_1(%arg0: i32) -> (i32, i32) {
    %c0_i32 = arith.constant 0 : i32
    %c0_i32_0 = arith.constant 0 : i32
    %c0_i32_1 = arith.constant 0 : i32
    return %c0_i32, %c0_i32_0 : i32, i32
  }
  func.func @transform_2(%arg0: i32) -> (i32, i32) {
    %c0_i32 = arith.constant 0 : i32
    %c0_i32_0 = arith.constant 0 : i32
    %c0_i32_1 = arith.constant 0 : i32
    return %c0_i32, %c0_i32_0 : i32, i32
  }
  func.func @transform_3(%arg0: i32) -> (i32, i32) {
    %c0_i32 = arith.constant 0 : i32
    %c0_i32_0 = arith.constant 0 : i32
    %c0_i32_1 = arith.constant 0 : i32
    return %c0_i32, %c0_i32_0 : i32, i32
  }
  func.func @transform_4(%arg0: i32) -> (i32, i32) {
    %c0_i32 = arith.constant 0 : i32
    %c0_i32_0 = arith.constant 0 : i32
    %c0_i32_1 = arith.constant 0 : i32
    return %c0_i32, %c0_i32_0 : i32, i32
  }
  func.func @transform_5(%arg0: i32) -> (i32, i32) {
    %c0_i32 = arith.constant 0 : i32
    %c0_i32_0 = arith.constant 0 : i32
    %c0_i32_1 = arith.constant 0 : i32
    return %c0_i32, %c0_i32_0 : i32, i32
  }
  func.func @transform_6(%arg0: i32) -> (i32, i32) {
    %c0_i32 = arith.constant 0 : i32
    %c0_i32_0 = arith.constant 0 : i32
    %c0_i32_1 = arith.constant 0 : i32
    return %c0_i32, %c0_i32_0 : i32, i32
  }
  func.func @transform_7(%arg0: i32) -> (i32, i32, i32) {
    %c0_i32 = arith.constant 0 : i32
    %c0_i32_0 = arith.constant 0 : i32
    %c0_i32_1 = arith.constant 0 : i32
    return %arg0, %c0_i32, %c0_i32_0 : i32, i32, i32
  }
}

</mosaic_0001>

<llo_original>
// kernel: tpu_custom_call.1
$region0: #{tpu_custom_call.1}
  #allocation0 [shape = 'u32[]', space=smem, size = 0x4, offset = 0x4, fixed_abs, tag = 'smem constant byte address 0x4 - core index']
  #allocation1 [shape = 'u32[144,128]{1,0:T(1,128)}', space=vmem, size = 0x12000, scoped, tag = 'internal scratch']
  %s0 = inlined_call_operand.vmem [shape: f32[2,16,256], index: 0, kind: input, shape index: {}]
  %s1 = inlined_call_operand.vmem [shape: bf16[4,16], index: 1, kind: input, shape index: {}]
  %s2 = inlined_call_operand.vmem [shape: f32[4,1], index: 2, kind: input, shape index: {}]
  %s3 = inlined_call_operand.vmem [shape: bf16[16,16], index: 3, kind: input, shape index: {}]
  %s4 = inlined_call_operand.vmem [shape: f32[16,1], index: 4, kind: input, shape index: {}]
  %s5 = inlined_call_operand.vmem [shape: bf16[32,16], index: 5, kind: input, shape index: {}]
  %s6 = inlined_call_operand.vmem [shape: f32[32,1], index: 6, kind: input, shape index: {}]
  %s7 = inlined_call_operand.hbm [shape: f32[2,32,256], index: 7, kind: output, shape index: {}]
  %s8 = sld [smem:[#allocation0]]
  $region61: #{tpu_custom_call.1} parent=0
    _
  %s10 = ssub.s32 1, %s8
  %s11 = scalar_select 0, %s10, %s8
  $region1: #{tpu_custom_call.1} parent=0
    #allocation2 [shape = 'u8[65536]{0}', space=vmem, size = 0x10000, scoped, tag = 'output window, operand 0']
    #allocation3 [shape = 's32[2]{0}', space=sflag, size = 0x8, scoped, tag = 'scoped memory for tpu_custom_call.1']
    %12 = vsyncpa [#allocation3], 0
    %s13 = scalar_lea.sflag [#allocation3], 1
    %14 = vsyncpa %s13, 0
    loop: start=0, step=1, limit=4
    $region2: #{tpu_custom_call.1} parent=1 // loop_pre_header
      _
    $region3: #{tpu_custom_call.1} parent=1 // loop_header
      %s16 = sphi 0, %s20
      %p17 = scmp.ge.s32.totalorder %s16, 4
      %s26 = sphi 0, %s28
      %s29 = sphi 0, %s26
      %s30 = sphi 0, %s29
      %s46 = sphi 0, %s30
      %s50 = sphi 0, %s50
      %s52 = sphi 0, %s50
      %s53 = sphi 0, %s52
      %s67 = sphi 0, %s53
      %s71 = sphi 0, %s71
      %s73 = sphi 0, %s71
      %s74 = sphi 0, %s73
      %s88 = sphi 0, %s74
      %s92 = sphi 0, %s92
      %s94 = sphi 0, %s92
      %s95 = sphi 0, %s94
      %s109 = sphi 0, %s95
      %s113 = sphi 0, %s113
      %s115 = sphi 0, %s113
      %s116 = sphi 0, %s115
      %s130 = sphi 0, %s116
      %s134 = sphi 0, %s134
      %s136 = sphi 0, %s134
      %s137 = sphi 0, %s136
      %s151 = sphi 0, %s137
      %s155 = sphi 0, %s155
      %s157 = sphi 0, %s155
      %s158 = sphi 0, %s157
      %s172 = sphi 0, %s158
      %s178 = sphi 0, %s180
      %s181 = sphi 0, %s178
      %s182 = sphi 0, %s181
      %s198 = sphi 0, %s182
    $region4: #{tpu_custom_call.1} parent=1 // loop_header_branch
      %19 = sbr.rel (%p17) target = $region8
    $region5: #{tpu_custom_call.1} parent=1 // loop_body
      %s21 = ssub.s32 %s16, 1
      %s22 = ssub.s32 %s16, 2
      %s23 = sadd.s32 %s16, 1
      %s24 = ssub.s32 %s16, %s23
      %p25 = scmp.eq.s32.totalorder %s24, 0
      %s27 = sadd.s32 %s26, 1
      %s28 = scalar_select %p25, %s26, %s27
      %p31 = pneg %p25
      %p32 = scmp.eq.s32.totalorder %s16, 1
      %p33 = por %p31, %p32
      %p34 = scmp.ne.s32.totalorder %s26, %s29
      %p35 = scmp.eq.s32.totalorder %s16, 0
      %p36 = por %p34, %p35
      %p37 = scmp.ne.s32.totalorder %s26, %s29
      %p38 = scmp.eq.s32.totalorder %s21, 1
      %p39 = por %p37, %p38
      %p40 = scmp.ne.s32.totalorder %s29, %s30
      %p41 = scmp.eq.s32.totalorder %s21, 0
      %p42 = por %p40, %p41
      %p43 = scmp.ne.s32.totalorder %s29, %s30
      %p44 = scmp.eq.s32.totalorder %s22, 1
      %p45 = por %p43, %p44
      %p47 = scmp.ne.s32.totalorder %s30, %s46
      %p48 = scmp.eq.s32.totalorder %s22, 0
      %p49 = por %p47, %p48
      %s51 = sadd.s32 %s50, 1
      %p54 = scmp.eq.s32.totalorder %s16, 1
      %p55 = scmp.ne.s32.totalorder %s50, %s52
      %p56 = scmp.eq.s32.totalorder %s16, 0
      %p57 = por %p55, %p56
      %p58 = scmp.ne.s32.totalorder %s50, %s52
      %p59 = scmp.eq.s32.totalorder %s21, 1
      %p60 = por %p58, %p59
      %p61 = scmp.ne.s32.totalorder %s52, %s53
      %p62 = scmp.eq.s32.totalorder %s21, 0
      %p63 = por %p61, %p62
      %p64 = scmp.ne.s32.totalorder %s52, %s53
      %p65 = scmp.eq.s32.totalorder %s22, 1
      %p66 = por %p64, %p65
      %p68 = scmp.ne.s32.totalorder %s53, %s67
      %p69 = scmp.eq.s32.totalorder %s22, 0
      %p70 = por %p68, %p69
      %s72 = sadd.s32 %s71, 1
      %p75 = scmp.eq.s32.totalorder %s16, 1
      %p76 = scmp.ne.s32.totalorder %s71, %s73
      %p77 = scmp.eq.s32.totalorder %s16, 0
      %p78 = por %p76, %p77
      %p79 = scmp.ne.s32.totalorder %s71, %s73
      %p80 = scmp.eq.s32.totalorder %s21, 1
      %p81 = por %p79, %p80
      %p82 = scmp.ne.s32.totalorder %s73, %s74
      %p83 = scmp.eq.s32.totalorder %s21, 0
      %p84 = por %p82, %p83
      %p85 = scmp.ne.s32.totalorder %s73, %s74
      %p86 = scmp.eq.s32.totalorder %s22, 1
      %p87 = por %p85, %p86
      %p89 = scmp.ne.s32.totalorder %s74, %s88
      %p90 = scmp.eq.s32.totalorder %s22, 0
      %p91 = por %p89, %p90
      %s93 = sadd.s32 %s92, 1
      %p96 = scmp.eq.s32.totalorder %s16, 1
      %p97 = scmp.ne.s32.totalorder %s92, %s94
      %p98 = scmp.eq.s32.totalorder %s16, 0
      %p99 = por %p97, %p98
      %p100 = scmp.ne.s32.totalorder %s92, %s94
      %p101 = scmp.eq.s32.totalorder %s21, 1
      %p102 = por %p100, %p101
      %p103 = scmp.ne.s32.totalorder %s94, %s95
      %p104 = scmp.eq.s32.totalorder %s21, 0
      %p105 = por %p103, %p104
      %p106 = scmp.ne.s32.totalorder %s94, %s95
      %p107 = scmp.eq.s32.totalorder %s22, 1
      %p108 = por %p106, %p107
      %p110 = scmp.ne.s32.totalorder %s95, %s109
      %p111 = scmp.eq.s32.totalorder %s22, 0
      %p112 = por %p110, %p111
      %s114 = sadd.s32 %s113, 1
      %p117 = scmp.eq.s32.totalorder %s16, 1
      %p118 = scmp.ne.s32.totalorder %s113, %s115
      %p119 = scmp.eq.s32.totalorder %s16, 0
      %p120 = por %p118, %p119
      %p121 = scmp.ne.s32.totalorder %s113, %s115
      %p122 = scmp.eq.s32.totalorder %s21, 1
      %p123 = por %p121, %p122
      %p124 = scmp.ne.s32.totalorder %s115, %s116
      %p125 = scmp.eq.s32.totalorder %s21, 0
      %p126 = por %p124, %p125
      %p127 = scmp.ne.s32.totalorder %s115, %s116
      %p128 = scmp.eq.s32.totalorder %s22, 1
      %p129 = por %p127, %p128
      %p131 = scmp.ne.s32.totalorder %s116, %s130
      %p132 = scmp.eq.s32.totalorder %s22, 0
      %p133 = por %p131, %p132
      %s135 = sadd.s32 %s134, 1
      %p138 = scmp.eq.s32.totalorder %s16, 1
      %p139 = scmp.ne.s32.totalorder %s134, %s136
      %p140 = scmp.eq.s32.totalorder %s16, 0
      %p141 = por %p139, %p140
      %p142 = scmp.ne.s32.totalorder %s134, %s136
      %p143 = scmp.eq.s32.totalorder %s21, 1
      %p144 = por %p142, %p143
      %p145 = scmp.ne.s32.totalorder %s136, %s137
      %p146 = scmp.eq.s32.totalorder %s21, 0
      %p147 = por %p145, %p146
      %p148 = scmp.ne.s32.totalorder %s136, %s137
      %p149 = scmp.eq.s32.totalorder %s22, 1
      %p150 = por %p148, %p149
      %p152 = scmp.ne.s32.totalorder %s137, %s151
      %p153 = scmp.eq.s32.totalorder %s22, 0
      %p154 = por %p152, %p153
      %s156 = sadd.s32 %s155, 1
      %p159 = scmp.eq.s32.totalorder %s16, 1
      %p160 = scmp.ne.s32.totalorder %s155, %s157
      %p161 = scmp.eq.s32.totalorder %s16, 0
      %p162 = por %p160, %p161
      %p163 = scmp.ne.s32.totalorder %s155, %s157
      %p164 = scmp.eq.s32.totalorder %s21, 1
      %p165 = por %p163, %p164
      %p166 = scmp.ne.s32.totalorder %s157, %s158
      %p167 = scmp.eq.s32.totalorder %s21, 0
      %p168 = por %p166, %p167
      %p169 = scmp.ne.s32.totalorder %s157, %s158
      %p170 = scmp.eq.s32.totalorder %s22, 1
      %p171 = por %p169, %p170
      %p173 = scmp.ne.s32.totalorder %s158, %s172
      %p174 = scmp.eq.s32.totalorder %s22, 0
      %p175 = por %p173, %p174
      %s176 = ssub.s32 %s16, %s23
      %p177 = scmp.eq.s32.totalorder %s176, 0
      %s179 = sadd.s32 %s178, 1
      %s180 = scalar_select %p177, %s178, %s179
      %p183 = pneg %p177
      %p184 = scmp.eq.s32.totalorder %s16, 1
      %p185 = por %p183, %p184
      %p186 = scmp.ne.s32.totalorder %s178, %s181
      %p187 = scmp.eq.s32.totalorder %s16, 0
      %p188 = por %p186, %p187
      %p189 = scmp.ne.s32.totalorder %s178, %s181
      %p190 = scmp.eq.s32.totalorder %s21, 1
      %p191 = por %p189, %p190
      %p192 = scmp.ne.s32.totalorder %s181, %s182
      %p193 = scmp.eq.s32.totalorder %s21, 0
      %p194 = por %p192, %p193
      %p195 = scmp.ne.s32.totalorder %s181, %s182
      %p196 = scmp.eq.s32.totalorder %s22, 1
      %p197 = por %p195, %p196
      %p199 = scmp.ne.s32.totalorder %s182, %s198
      %p200 = scmp.eq.s32.totalorder %s22, 0
      %p201 = por %p199, %p200
      %p202 = scmp.le.s32.totalorder 1, %s16
      %p203 = scmp.lt.s32.totalorder %s16, 3
      %p204 = pnand %p202, %p203
      %p205 = pneg %p204
      // Predicated region
      $region9: #{tpu_custom_call.1} parent=5 // pred_check
        _
      $region10: #{tpu_custom_call.1} parent=5 // pred_check_branch
        %207 = sbr.rel (%p204) target = $region12
      $region11: #{tpu_custom_call.1} parent=5 // pred_region
        %s208 = ssub.s32 %s16, 1
        // Predicated region
        $region13: #{tpu_custom_call.1} parent=11 // pred_check
          %p209 = pneg %p63
        $region14: #{tpu_custom_call.1} parent=11 // pred_check_branch
          %211 = sbr.rel (%p209) target = $region16
        $region15: #{tpu_custom_call.1} parent=11 // pred_region
          _
        $region16: #{tpu_custom_call.1} parent=11 // pred_fallthru
          _
        // Predicated region
        $region17: #{tpu_custom_call.1} parent=11 // pred_check
          %p212 = pneg %p84
        $region18: #{tpu_custom_call.1} parent=11 // pred_check_branch
          %214 = sbr.rel (%p212) target = $region20
        $region19: #{tpu_custom_call.1} parent=11 // pred_region
          _
        $region20: #{tpu_custom_call.1} parent=11 // pred_fallthru
          _
        // Predicated region
        $region21: #{tpu_custom_call.1} parent=11 // pred_check
          %p215 = pneg %p105
        $region22: #{tpu_custom_call.1} parent=11 // pred_check_branch
          %217 = sbr.rel (%p215) target = $region24
        $region23: #{tpu_custom_call.1} parent=11 // pred_region
          _
        $region24: #{tpu_custom_call.1} parent=11 // pred_fallthru
          _
        // Predicated region
        $region25: #{tpu_custom_call.1} parent=11 // pred_check
          %p218 = pneg %p126
        $region26: #{tpu_custom_call.1} parent=11 // pred_check_branch
          %220 = sbr.rel (%p218) target = $region28
        $region27: #{tpu_custom_call.1} parent=11 // pred_region
          _
        $region28: #{tpu_custom_call.1} parent=11 // pred_fallthru
          _
        // Predicated region
        $region29: #{tpu_custom_call.1} parent=11 // pred_check
          %p221 = pneg %p147
        $region30: #{tpu_custom_call.1} parent=11 // pred_check_branch
          %223 = sbr.rel (%p221) target = $region32
        $region31: #{tpu_custom_call.1} parent=11 // pred_region
          _
        $region32: #{tpu_custom_call.1} parent=11 // pred_fallthru
          _
        // Predicated region
        $region33: #{tpu_custom_call.1} parent=11 // pred_check
          %p224 = pneg %p168
        $region34: #{tpu_custom_call.1} parent=11 // pred_check_branch
          %226 = sbr.rel (%p224) target = $region36
        $region35: #{tpu_custom_call.1} parent=11 // pred_region
          _
        $region36: #{tpu_custom_call.1} parent=11 // pred_fallthru
          _
      $region12: #{tpu_custom_call.1} parent=5 // pred_fallthru
        _
      %p227 = scmp.lt.s32.totalorder %s16, 2
      // Predicated region
      $region37: #{tpu_custom_call.1} parent=5 // pred_check
        %p228 = pneg %p227
      $region38: #{tpu_custom_call.1} parent=5 // pred_check_branch
        %230 = sbr.rel (%p228) target = $region40
      $region39: #{tpu_custom_call.1} parent=5 // pred_region
        // Predicated region
        $region41: #{tpu_custom_call.1} parent=39 // pred_check
          %p231 = pneg %p36
        $region42: #{tpu_custom_call.1} parent=39 // pred_check_branch
          %233 = sbr.rel (%p231) target = $region44
        $region43: #{tpu_custom_call.1} parent=39 // pred_region
          %p234 = scmp.lt.s32.totalorder %s16, 1
          %s235 = scalar_select %p234, %s16, 1
          %s236 = smul.addr %s235, 4
          %s237 = smul.addr %s236, 8
          %s238 = scalar_lea.vmem %s0, %s237
        $region44: #{tpu_custom_call.1} parent=39 // pred_fallthru
          _
      $region40: #{tpu_custom_call.1} parent=5 // pred_fallthru
        _
      %p239 = scmp.le.s32.totalorder 1, %s16
      %p240 = scmp.lt.s32.totalorder %s16, 3
      %p241 = pnand %p239, %p240
      %p242 = pneg %p241
      // Predicated region
      $region45: #{tpu_custom_call.1} parent=5 // pred_check
        _
      $region46: #{tpu_custom_call.1} parent=5 // pred_check_branch
        %244 = sbr.rel (%p241) target = $region48
      $region47: #{tpu_custom_call.1} parent=5 // pred_region
        %s245 = ssub.s32 %s16, 1
        %p246 = scmp.lt.s32.totalorder %s21, 1
        %s247 = scalar_select %p246, %s21, 1
        %s248 = smul.addr %s247, 4
        %s249 = smul.addr %s248, 8
        %s250 = scalar_lea.vmem %s0, %s249
        %p251 = pneg %p42
        %p252 = pneg %p39
        %p253 = pneg %p63
        %p254 = pneg %p60
        %p255 = pneg %p84
        %p256 = pneg %p81
        %p257 = pneg %p105
        %p258 = pneg %p102
        %p259 = pneg %p126
        %p260 = pneg %p123
        %p261 = pneg %p147
        %p262 = pneg %p144
        %p263 = pneg %p168
        %p264 = pneg %p165
        %p265 = pneg %p194
        %p266 = pneg %p191
        %s267 = sand.u32 %s181, 1
        %s268 = scalar_lea.sflag [#allocation3], %s267
        %s269 = sand.u32 %s181, 1
        %s270 = smul.addr %s269, 64
        %s271 = scalar_lea.vmem [#allocation2], %s270
        %p272 = scmp.lt.s32.totalorder %s21, 1
        %s273 = scalar_select %p272, %s21, 1
        %s274 = smul.addr %s273, 4
        %s275 = smul.addr %s274, 8
        %s276 = scalar_lea.vmem %s0, %s275
        %v280 = vld [vmem:[%s276] sm:$0xff]
        %v281 = vld [vmem:[%s276 + $0x8] sm:$0xff]
        %v282 = vld [vmem:[%s276 + $0x10] sm:$0xff]
        %v283 = vld [vmem:[%s276 + $0x18] sm:$0xff]
        %v284 = vpack.c.bf16 %v282, %v280
        %v285 = vpack.c.bf16 %v283, %v281
        %v286 = vld [vmem:[%s1] sm:$0x3]
        %v287 = vld [vmem:[%s2] sm:$0xf]
        %289 = vset.pattern.permute.xlu0 0
        %290 = vperm.xlu0 %289, %v287
        %v291 = vpop.permute.xlu0 %290
        %vm293 = vcmask 130048
        %v295 = vsel %vm293, %v286, 0
        %297 = vmatprep.subr.bf16.mxu0 %v285
        %298 = vmatpush1.bf16.msra.mxu0 %v284
        %299 = vmatprep.subr.bf16.mxu0 0
        %300 = vmatpush1.bf16.msra.mxu0 0
        %301 = vmatprep.subr.bf16.mxu0 0
        %302 = vmatpush1.bf16.msra.mxu0 0
        %303 = vmatprep.subr.bf16.mxu0 0
        %304 = vmatpush1.bf16.msra.mxu0 0
        %305 = vmatprep.subr.bf16.mxu0 0
        %306 = vmatpush1.bf16.msra.mxu0 0
        %307 = vmatprep.subr.bf16.mxu0 0
        %308 = vmatpush1.bf16.msra.mxu0 0
        %309 = vmatprep.subr.bf16.mxu0 0
        %310 = vmatpush1.bf16.msra.mxu0 0
        %311 = vmatprep.subr.bf16.mxu0 0
        %312 = vmatpush1.bf16.msra.mxu0 0
        %313 = vmatprep.subr.bf16.mxu0 0
        %314 = vmatpush1.bf16.msra.mxu0 0
        %315 = vmatprep.subr.bf16.mxu0 0
        %316 = vmatpush1.bf16.msra.mxu0 0
        %317 = vmatprep.subr.bf16.mxu0 0
        %318 = vmatpush1.bf16.msra.mxu0 0
        %319 = vmatprep.subr.bf16.mxu0 0
        %320 = vmatpush1.bf16.msra.mxu0 0
        %321 = vmatprep.subr.bf16.mxu0 0
        %322 = vmatpush1.bf16.msra.mxu0 0
        %323 = vmatprep.subr.bf16.mxu0 0
        %324 = vmatpush1.bf16.msra.mxu0 0
        %325 = vmatprep.subr.bf16.mxu0 0
        %326 = vmatpush1.bf16.msra.mxu0 0
        %327 = vmatprep.subr.bf16.mxu0 0
        %328 = vmatpush1.bf16.msra.mxu0 0
        %329 = vmatprep.mubr.bf16.mxu0 0
        %330 = vmatmul.mubr.bf16.gmra.mrb[0].mxu0 %v295
        %v331 = vpop.f32.mrb[0].mxu0
        %v332 = vadd.f32 %v291, %v331
        %v333 = vpop.f32.mrb[0].mxu0
        %v334 = vadd.f32 %v291, %v333
        %v335 = vpop.f32.mrb[0].mxu0
        %v336 = vpop.f32.mrb[0].mxu0
        %337 = vdwg.mxu0
        %v338 = vmax.f32 %v332, 0.0
        %v339 = vmax.f32 %v334, 0.0
        %v340 = vpack.c.bf16 %v338, %v338
        %v341 = vpack.c.bf16 %v339, %v339
        %344 = vrot.lane.b32.xlu0 %v340, 127
        %v345 = vpop.permute.xlu0 %344
        %346 = vrot.lane.b32.xlu0 %v341, 127
        %v347 = vpop.permute.xlu0 %346
        %vm348 = vcmask 1039360
        %v349 = vsel %vm348, %v345, %v347
        %vm351 = vcmask 1039360
        %v354 = vsel %vm351, %v347, 0
        %356 = vrot.lane.b32.xlu0 %v340, 112
        %v357 = vpop.permute.xlu0 %356
        %358 = vrot.lane.b32.xlu0 %v341, 112
        %v359 = vpop.permute.xlu0 %358
        %vm360 = vcmask 916480
        %v361 = vsel %vm360, %v357, %v359
        %vm362 = vcmask 916480
        %v364 = vsel %vm362, %v359, 0
        %365 = vrot.lane.b32.xlu0 %v340, 111
        %v366 = vpop.permute.xlu0 %365
        %367 = vrot.lane.b32.xlu0 %v341, 111
        %v368 = vpop.permute.xlu0 %367
        %vm369 = vcmask 908288
        %v370 = vsel %vm369, %v366, %v368
        %vm372 = vcmask 908288
        %v374 = vsel %vm372, %v368, 0
        %v376 = vlaneseq
        %v377 = vand.u32 %v376, 127
        %v378 = vadd.s32 %v377, 128
        %vm379 = vcmp.lt.s32.totalorder %v377, 0
        %v380 = vsub.s32 0, %v377
        %v381 = vsel %vm379, %v380, %v377
        %v382 = vshrl.u32 %v381, 4
        %v383 = vand.u32 %v381, 15
        %v384 = vsub.s32 0, %v383
        %v385 = vsel %vm379, %v384, %v383
        %vm386 = vcmp.lt.s32.totalorder %v378, 0
        %v387 = vsub.s32 0, %v378
        %v388 = vsel %vm386, %v387, %v378
        %v389 = vshrl.u32 %v388, 4
        %v390 = vand.u32 %v388, 15
        %v391 = vsub.s32 0, %v390
        %v392 = vsel %vm386, %v391, %v390
        %vm393 = vcmp.ne.s32.totalorder %v385, 0
        %vm394 = vcmp.ne.s32.totalorder %v392, 0
        %vm395 = vcmp.lt.s32.totalorder %v385, 0
        %vm396 = vcmp.lt.s32.totalorder %v392, 0
        %vm397 = vmand %vm395, %vm393
        %vm398 = vmand %vm396, %vm394
        %v399 = vadd.s32 %v385, 16
        %v400 = vadd.s32 %v392, 16
        %v401 = vsel %vm397, %v399, %v385
        %v402 = vsel %vm398, %v400, %v392
        %vm403 = vcmp.ne.s32.totalorder %v401, 15
        %vm404 = vcmp.ne.s32.totalorder %v402, 15
        %v405 = vsel %vm403, 1, 0
        %v406 = vsel %vm404, 1, 0
        %vm407 = vcmp.eq.s32.totalorder %v405, 1
        %vm408 = vcmp.eq.s32.totalorder %v406, 1
        %vm409 = vmpackc.low %vm408, %vm407
        %v410 = vsel %vm409, 65537, 0
        %v411 = vlaneseq
        %v412 = vshrl.u32 %v411, 7
        %v413 = vsub.s32 0, %v412
        %v414 = vrot.slane %v410, %v413
        %v415 = vlaneseq
        %v416 = vshrl.u32 %v415, 7
        %v417 = vsub.s32 4, %v416
        %v418 = vrot.slane %v410, %v417
        %vm419 = vcmp.ne.s16.totalorder %v414, 0
        %vm420 = vcmp.ne.s16.totalorder %v418, 0
        %v421 = vsel %vm419, %v349, 0
        %v422 = vsel %vm420, %v354, 0
        %v423 = vsel %vm419, %v370, 0
        %v424 = vsel %vm420, %v374, 0
        %v427 = vrot.slane %v421, 6
        %v428 = vrot.slane %v422, 6
        %v430 = vrot.slane %v361, 4
        %v431 = vrot.slane %v364, 4
        %v434 = vrot.slane %v423, 2
        %v435 = vrot.slane %v424, 2
        %vm436 = vcmask 1041408
        %v439 = vsel %vm436, %v340, %v427
        %v442 = vsel %vm436, %v341, %v428
        %vm443 = vcmask 1043456
        %v445 = vsel %vm443, %v439, %v430
        %v447 = vsel %vm443, %v442, %v431
        %vm448 = vcmask 1045504
        %v450 = vsel %vm448, %v445, %v434
        %v453 = vsel %vm448, %v447, %v435
        %v455 = vld [vmem:[%s3] sm:$0xf]
        %v456 = vld [vmem:[%s3 + $0x4] sm:$0xf]
        %v457 = vld [vmem:[%s4] sm:$0xff]
        %v458 = vld [vmem:[%s4 + $0x8] sm:$0xff]
        %460 = vset.pattern.permute.xlu0 0
        %461 = vperm.xlu0 %460, %v457
        %v462 = vpop.permute.xlu0 %461
        %465 = vset.pattern.permute.xlu0 0
        %466 = vperm.xlu0 %465, %v458
        %v467 = vpop.permute.xlu0 %466
        %v471 = vunpack.c.l.b16 %v455
        %v472 = vunpack.c.l.b16 %v456
        %v473 = vpack.c.b16 %v472, %v471
        %v475 = vsel %vm293, %v473, 0
        %477 = vmatprep.subr.bf16.mxu0 %v453
        %478 = vmatpush1.bf16.msra.mxu0 %v450
        %479 = vmatprep.subr.bf16.mxu0 0
        %480 = vmatpush1.bf16.msra.mxu0 0
        %481 = vmatprep.subr.bf16.mxu0 0
        %482 = vmatpush1.bf16.msra.mxu0 0
        %483 = vmatprep.subr.bf16.mxu0 0
        %484 = vmatpush1.bf16.msra.mxu0 0
        %485 = vmatprep.subr.bf16.mxu0 0
        %486 = vmatpush1.bf16.msra.mxu0 0
        %487 = vmatprep.subr.bf16.mxu0 0
        %488 = vmatpush1.bf16.msra.mxu0 0
        %489 = vmatprep.subr.bf16.mxu0 0
        %490 = vmatpush1.bf16.msra.mxu0 0
        %491 = vmatprep.subr.bf16.mxu0 0
        %492 = vmatpush1.bf16.msra.mxu0 0
        %493 = vmatprep.subr.bf16.mxu0 0
        %494 = vmatpush1.bf16.msra.mxu0 0
        %495 = vmatprep.subr.bf16.mxu0 0
        %496 = vmatpush1.bf16.msra.mxu0 0
        %497 = vmatprep.subr.bf16.mxu0 0
        %498 = vmatpush1.bf16.msra.mxu0 0
        %499 = vmatprep.subr.bf16.mxu0 0
        %500 = vmatpush1.bf16.msra.mxu0 0
        %501 = vmatprep.subr.bf16.mxu0 0
        %502 = vmatpush1.bf16.msra.mxu0 0
        %503 = vmatprep.subr.bf16.mxu0 0
        %504 = vmatpush1.bf16.msra.mxu0 0
        %505 = vmatprep.subr.bf16.mxu0 0
        %506 = vmatpush1.bf16.msra.mxu0 0
        %507 = vmatprep.subr.bf16.mxu0 0
        %508 = vmatpush1.bf16.msra.mxu0 0
        %509 = vmatprep.mubr.bf16.mxu0 0
        %510 = vmatmul.mubr.bf16.gmra.mrb[0].mxu0 %v475
        %v511 = vpop.f32.mrb[0].mxu0
        %v512 = vadd.f32 %v462, %v511
        %v513 = vpop.f32.mrb[0].mxu0
        %v514 = vadd.f32 %v462, %v513
        %v515 = vpop.f32.mrb[0].mxu0
        %v516 = vadd.f32 %v467, %v515
        %v517 = vpop.f32.mrb[0].mxu0
        %v518 = vadd.f32 %v467, %v517
        %519 = vdwg.mxu0
        %v520 = vmax.f32 %v512, 0.0
        %v521 = vmax.f32 %v514, 0.0
        %v522 = vmax.f32 %v516, 0.0
        %v523 = vmax.f32 %v518, 0.0
        %v524 = vld [vmem:[%s5] sm:$0xf]
        %v525 = vld [vmem:[%s5 + $0x4] sm:$0xf]
        %v526 = vld [vmem:[%s5 + $0x8] sm:$0xf]
        %v527 = vld [vmem:[%s5 + $0xc] sm:$0xf]
        %v528 = vpack.c.bf16 %v522, %v520
        %v529 = vpack.c.bf16 %v523, %v521
        %v530 = vld [vmem:[%s6] sm:$0xff]
        %v531 = vld [vmem:[%s6 + $0x8] sm:$0xff]
        %v532 = vld [vmem:[%s6 + $0x10] sm:$0xff]
        %v533 = vld [vmem:[%s6 + $0x18] sm:$0xff]
        %535 = vset.pattern.permute.xlu0 0
        %536 = vperm.xlu0 %535, %v530
        %v537 = vpop.permute.xlu0 %536
        %540 = vset.pattern.permute.xlu0 0
        %541 = vperm.xlu0 %540, %v531
        %v542 = vpop.permute.xlu0 %541
        %545 = vset.pattern.permute.xlu0 0
        %546 = vperm.xlu0 %545, %v532
        %v547 = vpop.permute.xlu0 %546
        %550 = vset.pattern.permute.xlu0 0
        %551 = vperm.xlu0 %550, %v533
        %v552 = vpop.permute.xlu0 %551
        %v558 = vunpack.c.l.b16 %v524
        %v559 = vunpack.c.l.b16 %v525
        %v560 = vunpack.c.l.b16 %v526
        %v561 = vunpack.c.l.b16 %v527
        %v562 = vpack.c.b16 %v559, %v558
        %v563 = vpack.c.b16 %v561, %v560
        %v565 = vsel %vm293, %v562, 0
        %v568 = vsel %vm293, %v563, 0
        %570 = vmatprep.subr.bf16.mxu0 %v529
        %571 = vmatpush1.bf16.msra.mxu0 %v528
        %572 = vmatprep.subr.bf16.mxu0 0
        %573 = vmatpush1.bf16.msra.mxu0 0
        %574 = vmatprep.subr.bf16.mxu0 0
        %575 = vmatpush1.bf16.msra.mxu0 0
        %576 = vmatprep.subr.bf16.mxu0 0
        %577 = vmatpush1.bf16.msra.mxu0 0
        %578 = vmatprep.subr.bf16.mxu0 0
        %579 = vmatpush1.bf16.msra.mxu0 0
        %580 = vmatprep.subr.bf16.mxu0 0
        %581 = vmatpush1.bf16.msra.mxu0 0
        %582 = vmatprep.subr.bf16.mxu0 0
        %583 = vmatpush1.bf16.msra.mxu0 0
        %584 = vmatprep.subr.bf16.mxu0 0
        %585 = vmatpush1.bf16.msra.mxu0 0
        %586 = vmatprep.subr.bf16.mxu0 0
        %587 = vmatpush1.bf16.msra.mxu0 0
        %588 = vmatprep.subr.bf16.mxu0 0
        %589 = vmatpush1.bf16.msra.mxu0 0
        %590 = vmatprep.subr.bf16.mxu0 0
        %591 = vmatpush1.bf16.msra.mxu0 0
        %592 = vmatprep.subr.bf16.mxu0 0
        %593 = vmatpush1.bf16.msra.mxu0 0
        %594 = vmatprep.subr.bf16.mxu0 0
        %595 = vmatpush1.bf16.msra.mxu0 0
        %596 = vmatprep.subr.bf16.mxu0 0
        %597 = vmatpush1.bf16.msra.mxu0 0
        %598 = vmatprep.subr.bf16.mxu0 0
        %599 = vmatpush1.bf16.msra.mxu0 0
        %600 = vmatprep.subr.bf16.mxu0 0
        %601 = vmatpush1.bf16.msra.mxu0 0
        %602 = vmatprep.mubr.bf16.mxu0 0
        %603 = vmatmul.mubr.bf16.gmra.mrb[0].mxu0 %v565
        %v604 = vpop.f32.mrb[0].mxu0
        %v605 = vadd.f32 %v537, %v604
        %v606 = vpop.f32.mrb[0].mxu0
        %v607 = vadd.f32 %v537, %v606
        %v608 = vpop.f32.mrb[0].mxu0
        %v609 = vadd.f32 %v542, %v608
        %v610 = vpop.f32.mrb[0].mxu0
        %v611 = vadd.f32 %v542, %v610
        %612 = vmatprep.mubr.bf16.mxu0 0
        %613 = vmatmul.mubr.bf16.gmra.mrb[0].mxu0 %v568
        %v614 = vpop.f32.mrb[0].mxu0
        %v615 = vadd.f32 %v547, %v614
        %v616 = vpop.f32.mrb[0].mxu0
        %v617 = vadd.f32 %v547, %v616
        %v618 = vpop.f32.mrb[0].mxu0
        %v619 = vadd.f32 %v552, %v618
        %v620 = vpop.f32.mrb[0].mxu0
        %v621 = vadd.f32 %v552, %v620
        %622 = vdwg.mxu0
        %v623 = vmax.f32 %v605, 0.0
        %v624 = vmax.f32 %v607, 0.0
        %v625 = vmax.f32 %v609, 0.0
        %v626 = vmax.f32 %v611, 0.0
        %v627 = vmax.f32 %v615, 0.0
        %v628 = vmax.f32 %v617, 0.0
        %v629 = vmax.f32 %v619, 0.0
        %v630 = vmax.f32 %v621, 0.0
        %631 = vst [vmem:[%s271] sm:$0xff] %v623
        %632 = vst [vmem:[%s271 + $0x8] sm:$0xff] %v624
        %633 = vst [vmem:[%s271 + $0x10] sm:$0xff] %v625
        %634 = vst [vmem:[%s271 + $0x18] sm:$0xff] %v626
        %635 = vst [vmem:[%s271 + $0x20] sm:$0xff] %v627
        %636 = vst [vmem:[%s271 + $0x28] sm:$0xff] %v628
        %637 = vst [vmem:[%s271 + $0x30] sm:$0xff] %v629
        %638 = vst [vmem:[%s271 + $0x38] sm:$0xff] %v630
        %s639 = sand.u32 %s181, 1
        %s640 = scalar_lea.sflag [#allocation3], %s639
        %s641 = sand.u32 %s181, 1
        %s642 = smul.addr %s641, 64
        %s643 = scalar_lea.vmem [#allocation2], %s642
        // Predicated region
        $region49: #{tpu_custom_call.1} parent=47 // pred_check
          %p644 = pneg %p191
        $region50: #{tpu_custom_call.1} parent=47 // pred_check_branch
          %646 = sbr.rel (%p644) target = $region52
        $region51: #{tpu_custom_call.1} parent=47 // pred_region
          %s648 = ssub.s32 1024, 1024
          %649 = vsyncadd %s640, %s648
          %s650 = smul.addr %s21, 8
          %s651 = smul.addr %s650, 128
          %s652 = scalar_lea.hbm %s7, %s651
          %s653 = sshll.u32 %s643, 4
          %s654 = int_to_ptr.vmem [resolvable:$true] %s653
          %659 = dma.vmem_to_hbm [thread:$0]  %s654, 1024, %s652, %s640, 256, 256, 16
        $region52: #{tpu_custom_call.1} parent=47 // pred_fallthru
          _
      $region48: #{tpu_custom_call.1} parent=5 // pred_fallthru
        _
      %p660 = scmp.le.s32.totalorder 2, %s16
      // Predicated region
      $region53: #{tpu_custom_call.1} parent=5 // pred_check
        %p661 = pneg %p660
      $region54: #{tpu_custom_call.1} parent=5 // pred_check_branch
        %663 = sbr.rel (%p661) target = $region56
      $region55: #{tpu_custom_call.1} parent=5 // pred_region
        %s664 = ssub.s32 %s16, 2
        // Predicated region
        $region57: #{tpu_custom_call.1} parent=55 // pred_check
          %p665 = pneg %p197
        $region58: #{tpu_custom_call.1} parent=55 // pred_check_branch
          %667 = sbr.rel (%p665) target = $region60
        $region59: #{tpu_custom_call.1} parent=55 // pred_region
          %s668 = sand.u32 %s182, 1
          %s669 = scalar_lea.sflag [#allocation3], %s668
          %s670 = sand.u32 %s182, 1
          %s671 = smul.addr %s670, 64
          %s672 = scalar_lea.vmem [#allocation2], %s671
          %673 = dma.done %s669, 1024
        $region60: #{tpu_custom_call.1} parent=55 // pred_fallthru
          _
      $region56: #{tpu_custom_call.1} parent=5 // pred_fallthru
        _
    $region6: #{tpu_custom_call.1} parent=1 // loop_footer
      %s20 = sadd.s32 1, %s16
    $region7: #{tpu_custom_call.1} parent=1 // loop_footer_branch
      %15 = sbr.rel target = $region3
    $region8: #{tpu_custom_call.1} parent=1 // loop_exit
      _
    %674 = vsyncpa [#allocation3], 1
    %s675 = scalar_lea.sflag [#allocation3], 1
    %676 = vsyncpa %s675, 1

</llo_original>
